<compile_context>
chip_gen: v6e
topology: v6e:2x2x1
jax: 0.10.0
libtpu: 0.0.40
codegen_flags: <defaults>
</compile_context>

<pallas_src>
import functools

import jax
import jax.numpy as jnp
from jax import lax
from jax.experimental import pallas as pl
from jax.experimental.pallas import tpu as pltpu

_IGNORE_INDEX = -100


def _ce_tile_kernel(logits_ref, labels_ref, out_ref, *, total_t):
    """One (batch row, T-tile) step of masked cross-entropy partial sums.

    logits_ref: (1, TILE_T, V) float (f32 or bf16)  VMEM  (unshifted rows)
    labels_ref: (1, TILE_T, 1) int32                VMEM  (already shifted)
    out_ref:    (1, 1, 2)      float32              SMEM  [loss_sum, valid_cnt]
    """
    t = pl.program_id(1)

    x = logits_ref[0]                      # (TILE_T, V), input dtype (no eager f32 copy)
    labels = labels_ref[0]                 # (TILE_T, 1) int32
    tt, v = x.shape

    # Mask rows past the true shifted length T = S-1: this both implements the
    # "shift" (drops row S-1) and masks ragged-tile padding rows, whose logits
    # and labels are undefined.
    row_ids = t * tt + lax.broadcasted_iota(jnp.int32, (tt, 1), 0)
    in_bounds = row_ids < total_t
    valid = jnp.logical_and(in_bounds, labels != _IGNORE_INDEX)        # (TILE_T, 1)

    # Numerically stable logsumexp; only the exp/accumulate path runs in f32 so
    # bf16 inputs stay bf16 on the streamed side (v6e/v7x have bf16 VPU).
    m = jnp.max(x, axis=-1, keepdims=True)                              # (TILE_T, 1)
    ex = jnp.exp((x - m).astype(jnp.float32))                           # (TILE_T, V) f32
    lse = jnp.log(jnp.sum(ex, axis=-1, keepdims=True)) + m.astype(jnp.float32)

    # Gather x[t, labels[t]] via a one-hot select (no vector gather on TPU).
    vocab_ids = lax.broadcasted_iota(jnp.int32, (tt, v), 1)
    onehot = vocab_ids == labels
    correct = jnp.sum(jnp.where(onehot, x, 0), axis=-1,
                      keepdims=True).astype(jnp.float32)                # (TILE_T, 1)

    tok_loss = jnp.where(valid, lse - correct, 0.0)                     # (TILE_T, 1)

    out_ref[0, 0, 0] = jnp.sum(tok_loss)
    out_ref[0, 0, 1] = jnp.sum(valid.astype(jnp.float32))


def _round_up(x, m):
    return ((x + m - 1) // m) * m


def _pick_tile_t(total_t, vocab, itemsize, target_bytes=8 * 1024 * 1024):
    """Largest multiple-of-8 T tile whose logits block is <= ~8 MiB.

    ~8 MiB/block keeps two pipeline buffers under the scoped-VMEM budget on
    v5e/v6e and comfortably under the 64 MiB physical VMEM of a v7x TensorCore.
    """
    # TODO(synk): for extreme vocabularies (>~2M f32) a V grid axis with an
    # online-logsumexp accumulator would be needed to shrink blocks further.
    tile = max(8, (target_bytes // max(vocab * itemsize, 1)) // 8 * 8)
    return int(min(tile, _round_up(total_t, 8)))


@functools.partial(jax.jit, static_argnames=("reduce", "tile_t"))
def perplexity(logits: jax.Array, labels: jax.Array, reduce: bool = True,
               tile_t=None) -> jax.Array:
    """logits: (B, S, V) float (f32/bf16); labels: (B, S) int -> scalar or (B,)."""
    B, S, V = logits.shape
    assert S >= 2, "need at least 2 sequence positions to shift"
    T = S - 1

    if tile_t is None:
        tile_t = _pick_tile_t(T, V, jnp.dtype(logits.dtype).itemsize)
    tile_t = int(tile_t)
    num_t = -(-T // tile_t)

    # Labels are tiny: shifting them here costs nothing. The (large) logits are
    # passed unshifted; the kernel masks row S-1 via the row-index iota.
    shift_labels = labels[:, 1:].astype(jnp.int32).reshape(B, T, 1)

    kernel = functools.partial(_ce_tile_kernel, total_t=T)

    partials = pl.pallas_call(
        kernel,
        out_shape=jax.ShapeDtypeStruct((B, num_t, 2), jnp.float32),
        grid_spec=pltpu.PrefetchScalarGridSpec(
            num_scalar_prefetch=0,
            grid=(B, num_t),
            in_specs=[
                pl.BlockSpec((1, tile_t, V), lambda b, t: (b, t, 0)),
                pl.BlockSpec((1, tile_t, 1), lambda b, t: (b, t, 0)),
            ],
            out_specs=pl.BlockSpec(
                (1, 1, 2), lambda b, t: (b, t, 0),
                memory_space=pltpu.MemorySpace.SMEM),
        ),
        compiler_params=pltpu.CompilerParams(
            # Every grid step writes its own output block -> both axes are
            # independent; lets Mosaic shard across both v7x TensorCores.
            dimension_semantics=("parallel", "parallel"),
            vmem_limit_bytes=48 * 1024 * 1024,
        ),
    )(logits, shift_labels)

    # Per-row token mean = (sum of masked losses) / (sum of valid counts),
    # accumulated across T tiles (never an average of per-tile means).
    loss_sum = jnp.sum(partials[:, :, 0], axis=1)
    n_valid = jnp.sum(partials[:, :, 1], axis=1)
    per_batch = loss_sum / n_valid
    return jnp.mean(per_batch) if reduce else per_batch


def _reference(logits, labels, reduce=True):
    """Pure-JAX reference mirroring the PyTorch module."""
    shift_logits = logits[:, :-1, :].astype(jnp.float32)
    shift_labels = labels[:, 1:]
    logp = jax.nn.log_softmax(shift_logits, axis=-1)
    nll = -jnp.take_along_axis(logp, shift_labels[..., None], axis=-1)[..., 0]
    valid = (shift_labels != _IGNORE_INDEX).astype(jnp.float32)
    per_batch = jnp.sum(nll * valid, axis=-1) / jnp.sum(valid, axis=-1)
    return jnp.mean(per_batch) if reduce else per_batch


if __name__ == "__main__":
    key = jax.random.PRNGKey(0)
    k1, k2, k3, k4 = jax.random.split(key, 4)

    # Test 1: tiny shapes, single T tile, reduce=True.
    B, S, V = 2, 8, 32
    logits = jax.random.normal(k1, (B, S, V), dtype=jnp.float32)
    labels = jax.random.randint(k2, (B, S), 0, V, dtype=jnp.int32)
    out = jax.block_until_ready(perplexity(logits, labels, reduce=True))
    ref = _reference(logits, labels, reduce=True)
    assert out.shape == ()
    assert jnp.allclose(out, ref, atol=1e-5, rtol=1e-5), (out, ref)

    # Test 2: multi-tile T with a ragged last tile, ignore_index labels, reduce=False.
    B2, S2, V2 = 2, 20, 256
    logits2 = jax.random.normal(k3, (B2, S2, V2), dtype=jnp.float32)
    labels2 = jax.random.randint(k4, (B2, S2), 0, V2, dtype=jnp.int32)
    labels2 = labels2.at[:, -3:].set(_IGNORE_INDEX)
    out2 = jax.block_until_ready(perplexity(logits2, labels2, reduce=False, tile_t=8))
    ref2 = _reference(logits2, labels2, reduce=False)
    assert out2.shape == (B2,)
    assert jnp.allclose(out2, ref2, atol=1e-5, rtol=1e-5), (out2, ref2)

    print("KERNEL_OK")
</pallas_src>

<mosaic_0001>
module attributes {stable_mosaic.version = 11 : i64} {
  func.func @_ce_tile_kernel(%arg0: i32, %arg1: i32, %arg2: memref<1x8x32xf32, #tpu.memory_space<vmem>>, %arg3: memref<1x8x1xi32, #tpu.memory_space<vmem>>, %arg4: memref<1x1x2xf32, #tpu.memory_space<smem>>) attributes {dimension_semantics = [#tpu.dimension_semantics<parallel>, #tpu.dimension_semantics<parallel>], iteration_bounds = array<i64: 2, 1>, scalar_prefetch = 0 : i64, scratch_operands = 0 : i64, tpu.core_type = #tpu.core_type<tc>, window_params = [{transform_indices = @transform_0, window_bounds = array<i64: 1, 8, 32>}, {transform_indices = @transform_1, window_bounds = array<i64: 1, 8, 1>}, {transform_indices = @transform_2, window_bounds = array<i64: 1, 1, 2>}]} {
    %c0 = arith.constant 0 : index
    %c0_0 = arith.constant 0 : index
    %c0_1 = arith.constant 0 : index
    %0 = vector.load %arg2[%c0, %c0_0, %c0_1] : memref<1x8x32xf32, #tpu.memory_space<vmem>>, vector<1x8x32xf32>
    %1 = vector.shape_cast %0 : vector<1x8x32xf32> to vector<8x32xf32>
    %c0_2 = arith.constant 0 : index
    %c0_3 = arith.constant 0 : index
    %c0_4 = arith.constant 0 : index
    %2 = vector.load %arg3[%c0_2, %c0_3, %c0_4] : memref<1x8x1xi32, #tpu.memory_space<vmem>>, vector<1x8x1xi32>
    %3 = vector.shape_cast %2 : vector<1x8x1xi32> to vector<8x1xi32>
    %c8_i32 = arith.constant 8 : i32
    %4 = arith.muli %arg1, %c8_i32 : i32
    %5 = tpu.iota {dimensions = array<i32: 0>} : vector<8x1xi32>
    %6 = vector.broadcast %4 : i32 to vector<8x1xi32>
    %7 = arith.addi %6, %5 : vector<8x1xi32>
    %c7_i32 = arith.constant 7 : i32
    %8 = vector.broadcast %c7_i32 : i32 to vector<8x1xi32>
    %9 = arith.cmpi slt, %7, %8 : vector<8x1xi32>
    %c-100_i32 = arith.constant -100 : i32
    %10 = vector.broadcast %c-100_i32 : i32 to vector<8x1xi32>
    %11 = arith.cmpi ne, %3, %10 : vector<8x1xi32>
    %12 = arith.andi %9, %11 : vector<8x1xi1>
    %cst = arith.constant dense<0xFF800000> : vector<8xf32>
    %13 = vector.multi_reduction <maximumf>, %1, %cst [1] : vector<8x32xf32> to vector<8xf32>
    %14 = vector.shape_cast %13 : vector<8xf32> to vector<8x1xf32>
    %15 = vector.broadcast %14 : vector<8x1xf32> to vector<8x32xf32>
    %16 = arith.subf %1, %15 : vector<8x32xf32>
    %17 = math.exp %16 : vector<8x32xf32>
    %cst_5 = arith.constant dense<0.000000e+00> : vector<8xf32>
    %18 = vector.multi_reduction <add>, %17, %cst_5 [1] : vector<8x32xf32> to vector<8xf32>
    %19 = vector.shape_cast %18 : vector<8xf32> to vector<8x1xf32>
    %20 = math.log %19 : vector<8x1xf32>
    %21 = arith.addf %20, %14 : vector<8x1xf32>
    %22 = tpu.iota {dimensions = array<i32: 1>} : vector<8x32xi32>
    %23 = vector.broadcast %3 : vector<8x1xi32> to vector<8x32xi32>
    %24 = arith.cmpi eq, %22, %23 : vector<8x32xi32>
    %c0_i32 = arith.constant 0 : i32
    %25 = arith.sitofp %c0_i32 : i32 to f32
    %26 = vector.broadcast %25 : f32 to vector<8x32xf32>
    %27 = arith.select %24, %1, %26 : vector<8x32xi1>, vector<8x32xf32>
    %cst_6 = arith.constant dense<0.000000e+00> : vector<8xf32>
    %28 = vector.multi_reduction <add>, %27, %cst_6 [1] : vector<8x32xf32> to vector<8xf32>
    %29 = vector.shape_cast %28 : vector<8xf32> to vector<8x1xf32>
    %30 = arith.subf %21, %29 : vector<8x1xf32>
    %cst_7 = arith.constant 0.000000e+00 : f32
    %31 = vector.broadcast %cst_7 : f32 to vector<8x1xf32>
    %32 = arith.select %12, %30, %31 : vector<8x1xi1>, vector<8x1xf32>
    %33 = vector.shape_cast %32 : vector<8x1xf32> to vector<1x8x1xf32>
    %cst_8 = arith.constant dense<0.000000e+00> : vector<1xf32>
    %34 = vector.multi_reduction <add>, %33, %cst_8 [1, 2] : vector<1x8x1xf32> to vector<1xf32>
    %35 = vector.shape_cast %34 : vector<1xf32> to vector<1x1x1xf32>
    %36 = vector.extract %35[0, 0, 0] : f32 from vector<1x1x1xf32>
    %c0_9 = arith.constant 0 : index
    %c0_10 = arith.constant 0 : index
    %c0_11 = arith.constant 0 : index
    %37 = memref.load %arg4[%c0_9, %c0_10, %c0_11] : memref<1x1x2xf32, #tpu.memory_space<smem>>
    memref.store %36, %arg4[%c0_9, %c0_10, %c0_11] : memref<1x1x2xf32, #tpu.memory_space<smem>>
    %38 = arith.extui %12 : vector<8x1xi1> to vector<8x1xi32>
    %39 = arith.sitofp %38 : vector<8x1xi32> to vector<8x1xf32>
    %40 = vector.shape_cast %39 : vector<8x1xf32> to vector<1x8x1xf32>
    %cst_12 = arith.constant dense<0.000000e+00> : vector<1xf32>
    %41 = vector.multi_reduction <add>, %40, %cst_12 [1, 2] : vector<1x8x1xf32> to vector<1xf32>
    %42 = vector.shape_cast %41 : vector<1xf32> to vector<1x1x1xf32>
    %43 = vector.extract %42[0, 0, 0] : f32 from vector<1x1x1xf32>
    %c0_13 = arith.constant 0 : index
    %c0_14 = arith.constant 0 : index
    %c1 = arith.constant 1 : index
    %44 = memref.load %arg4[%c0_13, %c0_14, %c1] : memref<1x1x2xf32, #tpu.memory_space<smem>>
    memref.store %43, %arg4[%c0_13, %c0_14, %c1] : memref<1x1x2xf32, #tpu.memory_space<smem>>
    return
  }
  func.func @transform_0(%arg0: i32, %arg1: i32) -> (i32, i32, i32) {
    %c0_i32 = arith.constant 0 : i32
    %c0_i32_0 = arith.constant 0 : i32
    return %arg0, %arg1, %c0_i32 : i32, i32, i32
  }
  func.func @transform_1(%arg0: i32, %arg1: i32) -> (i32, i32, i32) {
    %c0_i32 = arith.constant 0 : i32
    %c0_i32_0 = arith.constant 0 : i32
    return %arg0, %arg1, %c0_i32 : i32, i32, i32
  }
  func.func @transform_2(%arg0: i32, %arg1: i32) -> (i32, i32, i32) {
    %c0_i32 = arith.constant 0 : i32
    %c0_i32_0 = arith.constant 0 : i32
    return %arg0, %arg1, %c0_i32 : i32, i32, i32
  }
}

</mosaic_0001>

<llo_original>
// kernel: perplexity.1
$region0: #{perplexity.1}
  #allocation0 [shape = 'u32[]', space=smem, size = 0x4, offset = 0x4, fixed_abs, tag = 'smem constant byte address 0x4 - core index']
  #allocation1 [shape = 'u32[144,128]{1,0:T(1,128)}', space=vmem, size = 0x12000, scoped, tag = 'internal scratch']
  %s0 = inlined_call_operand.vmem [shape: f32[2,8,32], index: 0, kind: input, shape index: {}]
  %s1 = inlined_call_operand.vmem [shape: s32[2,7,1], index: 1, kind: input, shape index: {}]
  %s2 = inlined_call_operand.vmem [shape: f32[2,1,2], index: 2, kind: output, shape index: {}]
  %s3 = sld [smem:[#allocation0]]
  $region41: #{perplexity.1} parent=0
    _
  %s5 = ssub.s32 1, %s3
  %s6 = scalar_select 0, %s5, %s3
  $region1: #{perplexity.1} parent=0
    #allocation2 [shape = 'u8[1024]{0}', space=smem, size = 0x400, scoped, tag = 'output window, operand 0']
    #allocation3 [shape = 's32[2]{0}', space=sflag, size = 0x8, scoped, tag = 'scoped memory for perplexity.1']
    %7 = vsyncpa [#allocation3], 0
    %s8 = scalar_lea.sflag [#allocation3], 1
    %9 = vsyncpa %s8, 0
    loop: start=0, step=1, limit=4
    $region2: #{perplexity.1} parent=1 // loop_pre_header
      _
    $region3: #{perplexity.1} parent=1 // loop_header
      %s11 = sphi 0, %s15
      %p12 = scmp.ge.s32.totalorder %s11, 4
      %s18 = sphi 0, %s30
      %s19 = sphi 0, %s26
      %s20 = sphi 0, %s18
      %s21 = sphi 0, %s19
      %s22 = sphi 0, %s20
      %s23 = sphi 0, %s21
      %s35 = sphi 0, %s37
      %s38 = sphi 0, %s35
      %s39 = sphi 0, %s38
      %s55 = sphi 0, %s39
      %s63 = sphi 0, %s65
      %s66 = sphi 0, %s63
      %s67 = sphi 0, %s66
      %s83 = sphi 0, %s67
      %s91 = sphi 0, %s93
      %s94 = sphi 0, %s91
      %s95 = sphi 0, %s94
      %s111 = sphi 0, %s95
    $region4: #{perplexity.1} parent=1 // loop_header_branch
      %14 = sbr.rel (%p12) target = $region8
    $region5: #{perplexity.1} parent=1 // loop_body
      %s16 = ssub.s32 %s11, 1
      %s17 = ssub.s32 %s11, 2
      %s24 = sadd.s32 1, %s19
      %p25 = scmp.ge.s32.totalorder %s24, 1
      %s26 = scalar_select %p25, 0, %s24
      %s27 = sadd.s32 1, %s18
      %s28 = scalar_select %p25, %s27, %s18
      %p29 = scmp.ge.s32.totalorder %s28, 2
      %s30 = scalar_select %p29, 0, %s28
      %s31 = ssub.s32 %s18, %s30
      %s32 = ssub.s32 %s19, %s26
      %s33 = sor.u32 %s31, %s32
      %p34 = scmp.eq.s32.totalorder %s33, 0
      %s36 = sadd.s32 %s35, 1
      %s37 = scalar_select %p34, %s35, %s36
      %p40 = pneg %p34
      %p41 = scmp.eq.s32.totalorder %s11, 1
      %p42 = por %p40, %p41
      %p43 = scmp.ne.s32.totalorder %s35, %s38
      %p44 = scmp.eq.s32.totalorder %s11, 0
      %p45 = por %p43, %p44
      %p46 = scmp.ne.s32.totalorder %s35, %s38
      %p47 = scmp.eq.s32.totalorder %s16, 1
      %p48 = por %p46, %p47
      %p49 = scmp.ne.s32.totalorder %s38, %s39
      %p50 = scmp.eq.s32.totalorder %s16, 0
      %p51 = por %p49, %p50
      %p52 = scmp.ne.s32.totalorder %s38, %s39
      %p53 = scmp.eq.s32.totalorder %s17, 1
      %p54 = por %p52, %p53
      %p56 = scmp.ne.s32.totalorder %s39, %s55
      %p57 = scmp.eq.s32.totalorder %s17, 0
      %p58 = por %p56, %p57
      %s59 = ssub.s32 %s18, %s30
      %s60 = ssub.s32 %s19, %s26
      %s61 = sor.u32 %s59, %s60
      %p62 = scmp.eq.s32.totalorder %s61, 0
      %s64 = sadd.s32 %s63, 1
      %s65 = scalar_select %p62, %s63, %s64
      %p68 = pneg %p62
      %p69 = scmp.eq.s32.totalorder %s11, 1
      %p70 = por %p68, %p69
      %p71 = scmp.ne.s32.totalorder %s63, %s66
      %p72 = scmp.eq.s32.totalorder %s11, 0
      %p73 = por %p71, %p72
      %p74 = scmp.ne.s32.totalorder %s63, %s66
      %p75 = scmp.eq.s32.totalorder %s16, 1
      %p76 = por %p74, %p75
      %p77 = scmp.ne.s32.totalorder %s66, %s67
      %p78 = scmp.eq.s32.totalorder %s16, 0
      %p79 = por %p77, %p78
      %p80 = scmp.ne.s32.totalorder %s66, %s67
      %p81 = scmp.eq.s32.totalorder %s17, 1
      %p82 = por %p80, %p81
      %p84 = scmp.ne.s32.totalorder %s67, %s83
      %p85 = scmp.eq.s32.totalorder %s17, 0
      %p86 = por %p84, %p85
      %s87 = ssub.s32 %s18, %s30
      %s88 = ssub.s32 %s19, %s26
      %s89 = sor.u32 %s87, %s88
      %p90 = scmp.eq.s32.totalorder %s89, 0
      %s92 = sadd.s32 %s91, 1
      %s93 = scalar_select %p90, %s91, %s92
      %p96 = pneg %p90
      %p97 = scmp.eq.s32.totalorder %s11, 1
      %p98 = por %p96, %p97
      %p99 = scmp.ne.s32.totalorder %s91, %s94
      %p100 = scmp.eq.s32.totalorder %s11, 0
      %p101 = por %p99, %p100
      %p102 = scmp.ne.s32.totalorder %s91, %s94
      %p103 = scmp.eq.s32.totalorder %s16, 1
      %p104 = por %p102, %p103
      %p105 = scmp.ne.s32.totalorder %s94, %s95
      %p106 = scmp.eq.s32.totalorder %s16, 0
      %p107 = por %p105, %p106
      %p108 = scmp.ne.s32.totalorder %s94, %s95
      %p109 = scmp.eq.s32.totalorder %s17, 1
      %p110 = por %p108, %p109
      %p112 = scmp.ne.s32.totalorder %s95, %s111
      %p113 = scmp.eq.s32.totalorder %s17, 0
      %p114 = por %p112, %p113
      %p115 = scmp.le.s32.totalorder 1, %s11
      %p116 = scmp.lt.s32.totalorder %s11, 3
      %p117 = pnand %p115, %p116
      %p118 = pneg %p117
      // Predicated region
      $region9: #{perplexity.1} parent=5 // pred_check
        _
      $region10: #{perplexity.1} parent=5 // pred_check_branch
        %120 = sbr.rel (%p117) target = $region12
      $region11: #{perplexity.1} parent=5 // pred_region
        %s121 = ssub.s32 %s11, 1
      $region12: #{perplexity.1} parent=5 // pred_fallthru
        _
      %p122 = scmp.lt.s32.totalorder %s11, 2
      // Predicated region
      $region13: #{perplexity.1} parent=5 // pred_check
        %p123 = pneg %p122
      $region14: #{perplexity.1} parent=5 // pred_check_branch
        %125 = sbr.rel (%p123) target = $region16
      $region15: #{perplexity.1} parent=5 // pred_region
        // Predicated region
        $region17: #{perplexity.1} parent=15 // pred_check
          %p126 = pneg %p45
        $region18: #{perplexity.1} parent=15 // pred_check_branch
          %128 = sbr.rel (%p126) target = $region20
        $region19: #{perplexity.1} parent=15 // pred_region
          %p129 = scmp.lt.s32.totalorder %s18, 1
          %s130 = scalar_select %p129, %s18, 1
          %p131 = scmp.lt.s32.totalorder %s19, 0
          %s132 = scalar_select %p131, %s19, 0
          %s133 = sadd.s32 %s132, %s130
          %s134 = smul.addr %s133, 8
          %s135 = scalar_lea.vmem %s0, %s134
        $region20: #{perplexity.1} parent=15 // pred_fallthru
          _
        // Predicated region
        $region21: #{perplexity.1} parent=15 // pred_check
          %p136 = pneg %p73
        $region22: #{perplexity.1} parent=15 // pred_check_branch
          %138 = sbr.rel (%p136) target = $region24
        $region23: #{perplexity.1} parent=15 // pred_region
          %p139 = scmp.lt.s32.totalorder %s18, 1
          %s140 = scalar_select %p139, %s18, 1
          %p141 = scmp.lt.s32.totalorder %s19, 0
          %s142 = scalar_select %p141, %s19, 0
          %s143 = sadd.s32 %s142, %s140
          %s144 = smul.addr %s143, 8
          %s145 = scalar_lea.vmem %s1, %s144
        $region24: #{perplexity.1} parent=15 // pred_fallthru
          _
      $region16: #{perplexity.1} parent=5 // pred_fallthru
        _
      %p146 = scmp.le.s32.totalorder 1, %s11
      %p147 = scmp.lt.s32.totalorder %s11, 3
      %p148 = pnand %p146, %p147
      %p149 = pneg %p148
      // Predicated region
      $region25: #{perplexity.1} parent=5 // pred_check
        _
      $region26: #{perplexity.1} parent=5 // pred_check_branch
        %151 = sbr.rel (%p148) target = $region28
      $region27: #{perplexity.1} parent=5 // pred_region
        %s152 = ssub.s32 %s11, 1
        %p153 = scmp.lt.s32.totalorder %s20, 1
        %s154 = scalar_select %p153, %s20, 1
        %p155 = scmp.lt.s32.totalorder %s21, 0
        %s156 = scalar_select %p155, %s21, 0
        %s157 = sadd.s32 %s156, %s154
        %s158 = smul.addr %s157, 8
        %s159 = scalar_lea.vmem %s0, %s158
        %p160 = pneg %p51
        %p161 = pneg %p48
        %p162 = scmp.lt.s32.totalorder %s20, 1
        %s163 = scalar_select %p162, %s20, 1
        %p164 = scmp.lt.s32.totalorder %s21, 0
        %s165 = scalar_select %p164, %s21, 0
        %s166 = sadd.s32 %s165, %s163
        %s167 = smul.addr %s166, 8
        %s168 = scalar_lea.vmem %s1, %s167
        %p169 = pneg %p79
        %p170 = pneg %p76
        %p171 = pneg %p107
        %p172 = pneg %p104
        %s173 = sand.u32 %s94, 1
        %s174 = scalar_lea.sflag [#allocation3], %s173
        %s175 = sand.u32 %s94, 1
        %s176 = smul.addr %s175, 128
        %s177 = scalar_lea.smem [#allocation2], %s176
        %p178 = scmp.lt.s32.totalorder %s20, 1
        %s179 = scalar_select %p178, %s20, 1
        %p180 = scmp.lt.s32.totalorder %s21, 0
        %s181 = scalar_select %p180, %s21, 0
        %s182 = sadd.s32 %s181, %s179
        %s183 = smul.addr %s182, 8
        %s184 = scalar_lea.vmem %s0, %s183
        %p185 = scmp.lt.s32.totalorder %s20, 1
        %s186 = scalar_select %p185, %s20, 1
        %p187 = scmp.lt.s32.totalorder %s21, 0
        %s188 = scalar_select %p187, %s21, 0
        %s189 = sadd.s32 %s188, %s186
        %s190 = smul.addr %s189, 8
        %s191 = scalar_lea.vmem %s1, %s190
        %v192 = vld [vmem:[%s184] sm:$0xff]
        %v193 = vld [vmem:[%s191] sm:$0xff]
        %s194 = smul.u32 %s21, 8
        %v195 = vlaneseq
        %v196 = vshrl.u32 %v195, 7
        %v197 = vstv %s194
        %v198 = vadd.s32 %v197, %v196
        %vm199 = vcmp.lt.s32.totalorder %v198, 7
        %vm200 = vcmp.ne.s32.totalorder %v193, 4294967196
        %vm201 = vmand %vm199, %vm200
        %vm202 = vcmask 261120
        %v203 = vsel %vm202, %v192, -inf
        %204 = vmax.xlane.f32.xlu0 %v203
        %v205 = vpop.xlane.xlu0 %204
        %v206 = vsub.f32 %v192, %v205
        %v207 = vmul.f32 %v206, 1.442695
        %v208 = vpow.pop %v207
        %v209 = vsel %vm202, %v208, 0.0
        %210 = vadd.xlane.f32.xlu0 %v209
        %v211 = vpop.xlane.xlu0 %210
        %v212 = vlog2.pop %v211
        %v213 = vmul.f32 %v212, 0.6931472
        %v214 = vadd.f32 %v213, %v205
        %v215 = vlaneseq
        %v216 = vand.u32 %v215, 127
        %217 = vset.pattern.permute.xlu0 0
        %218 = vperm.xlu0 %217, %v193
        %v219 = vpop.permute.xlu0 %218
        %vm220 = vcmp.eq.s32.totalorder %v216, %v219
        %v221 = vsel %vm220, %v192, 0.0
        %v222 = vsel %vm202, %v221, 0.0
        %223 = vadd.xlane.f32.xlu0 %v222
        %v224 = vpop.xlane.xlu0 %223
        %v225 = vsub.f32 %v214, %v224
        %v226 = vsel %vm201, %v225, 0.0
        %vm227 = vcmask 7168
        %v228 = vsel %vm227, %v226, 0.0
        %229 = vadd.xlane.f32.xlu0 %v228
        %v230 = vpop.xlane.xlu0 %229
        %v231 = vrot.slane %v230, 4
        %v232 = vadd.f32 %v230, %v231
        %v233 = vrot.slane %v232, 2
        %v234 = vadd.f32 %v232, %v233
        %v235 = vrot.slane %v234, 1
        %v236 = vadd.f32 %v234, %v235
        %s237 = vtos %v236
        %s238 = scalar_lea.smem %s177, 0 [#allocation2]
        %239 = sst [smem:[%s238]] %s237
        %v240 = vsel %vm201, 1, 0
        %v241 = vcvt.s32.f32 %v240
        %v242 = vsel %vm227, %v241, 0.0
        %243 = vadd.xlane.f32.xlu0 %v242
        %v244 = vpop.xlane.xlu0 %243
        %v245 = vrot.slane %v244, 4
        %v246 = vadd.f32 %v244, %v245
        %v247 = vrot.slane %v246, 2
        %v248 = vadd.f32 %v246, %v247
        %v249 = vrot.slane %v248, 1
        %v250 = vadd.f32 %v248, %v249
        %s251 = vtos %v250
        %s252 = scalar_lea.smem %s177, 1 [#allocation2]
        %253 = sst [smem:[%s252]] %s251
        %s254 = sand.u32 %s94, 1
        %s255 = scalar_lea.sflag [#allocation3], %s254
        %s256 = sand.u32 %s94, 1
        %s257 = smul.addr %s256, 128
        %s258 = scalar_lea.smem [#allocation2], %s257
        // Predicated region
        $region29: #{perplexity.1} parent=27 // pred_check
          %p259 = pneg %p104
        $region30: #{perplexity.1} parent=27 // pred_check_branch
          %261 = sbr.rel (%p259) target = $region32
        $region31: #{perplexity.1} parent=27 // pred_region
          %s263 = ssub.s32 16, 16
          %264 = vsyncadd %s255, %s263
          %s265 = sadd.s32 %s21, %s20
          %s266 = scalar_lea.vmem %s2, %s265
          %s268 = sshll.u32 %s266, 4
          %s269 = int_to_ptr.vmem [resolvable:$true] %s268
          %271 = dma.smem_to_vmem %s258, 16, %s269, %s255
        $region32: #{perplexity.1} parent=27 // pred_fallthru
          _
      $region28: #{perplexity.1} parent=5 // pred_fallthru
        _
      %p272 = scmp.le.s32.totalorder 2, %s11
      // Predicated region
      $region33: #{perplexity.1} parent=5 // pred_check
        %p273 = pneg %p272
      $region34: #{perplexity.1} parent=5 // pred_check_branch
        %275 = sbr.rel (%p273) target = $region36
      $region35: #{perplexity.1} parent=5 // pred_region
        %s276 = ssub.s32 %s11, 2
        // Predicated region
        $region37: #{perplexity.1} parent=35 // pred_check
          %p277 = pneg %p110
        $region38: #{perplexity.1} parent=35 // pred_check_branch
          %279 = sbr.rel (%p277) target = $region40
        $region39: #{perplexity.1} parent=35 // pred_region
          %s280 = sand.u32 %s95, 1
          %s281 = scalar_lea.sflag [#allocation3], %s280
          %s282 = sand.u32 %s95, 1
          %s283 = smul.addr %s282, 128
          %s284 = scalar_lea.smem [#allocation2], %s283
          %285 = dma.done %s281, 16
        $region40: #{perplexity.1} parent=35 // pred_fallthru
          _
        %286 = sfence
      $region36: #{perplexity.1} parent=5 // pred_fallthru
        _
    $region6: #{perplexity.1} parent=1 // loop_footer
      %s15 = sadd.s32 1, %s11
    $region7: #{perplexity.1} parent=1 // loop_footer_branch
      %10 = sbr.rel target = $region3
    $region8: #{perplexity.1} parent=1 // loop_exit
      _
    %287 = vsyncpa [#allocation3], 1
    %s288 = scalar_lea.sflag [#allocation3], 1
    %289 = vsyncpa %s288, 1

</llo_original>
